<compile_context>
chip_gen: v7x
topology: tpu7x:2x2x1
jax: 0.10.0
libtpu: 0.0.40
codegen_flags: <defaults>
</compile_context>

<pallas_src>
import jax
import jax.numpy as jnp
from jax.experimental import pallas as pl
from jax.experimental.pallas import tpu as pltpu

HIDDEN = 128  # fixed by the module definition


def _disc_kernel(x_ref, w1_ref, b1_ref, w2_ref, b2_ref, o_ref):
    # ---- Layer 1: (TB, D) @ (D, 128) on the MXU, bf16 inputs, f32 accumulation.
    h = jnp.dot(x_ref[...], w1_ref[...], preferred_element_type=jnp.float32)
    h = h + b1_ref[...]                               # (1, 128) broadcast add
    # LeakyReLU(negative_slope=0.1) on the VPU.
    h = jnp.where(h > 0, h, 0.1 * h)

    # ---- Layer 2: 128 -> 1, emitted lane-dense as a (1, TB) row.
    # Contract the hidden dim of w2 (1,128) with the hidden dim of h (TB,128)
    # directly -> (1, TB); avoids a (TB,1)->(1,TB) relayout and masked stores.
    z = jnp.einsum("od,td->ot", w2_ref[...], h,
                   preferred_element_type=jnp.float32)  # (1, TB)
    z = z + b2_ref[0, 0]                               # scalar bias from SMEM

    # ---- Saturation-safe sigmoid (exp argument always <= 0, so no overflow).
    e = jnp.exp(-jnp.abs(z))                           # EUP, in (0, 1]
    inv = pl.reciprocal(1.0 + e, approx=True)          # EUP approx reciprocal
    sig = jnp.where(z >= 0, inv, e * inv)
    o_ref[...] = sig.astype(o_ref.dtype)


def _choose_tb(B, tb):
    """Batch tile: whole batch when small; otherwise a multiple of 256 capped so
    the grid has >= 2 iterations (keeps v7x's second TensorCore busy)."""
    if B <= 256:
        return B
    t = max(256, (min(tb, 1024) // 256) * 256)
    while t > 256 and -(-B // t) < 2:   # ceil-div < 2  -> shrink tile
        t -= 256
    return t


def discriminator_forward(x, w1, b1, w2, b2, *, tb=512):
    """Pallas TPU forward pass for Discriminator.

    x:  (B, D), w1: (D, 128), b1: (1, 128), w2: (1, 128), b2: (1, 1)  ->  (B, 1) f32
    x/w1 are cast to bf16 here (keep activations bf16 upstream in a real pipeline).
    """
    B, D = x.shape
    TB = _choose_tb(B, tb)
    num_tiles = pl.cdiv(B, TB)
    grid = (num_tiles,)

    x_bf = x.astype(jnp.bfloat16)
    w1_bf = w1.astype(jnp.bfloat16)
    b1 = b1.astype(jnp.float32)
    w2 = w2.astype(jnp.float32)
    b2 = b2.astype(jnp.float32)

    # VMEM budget: x double-buffer + resident bf16 w1 + small vectors + out,
    # with generous headroom; stays under v7x's 64 MiB physical VMEM.
    need = (2 * TB * D * 2            # x double buffer (bf16)
            + 2 * D * HIDDEN * 2      # w1 (bf16)
            + 4 * HIDDEN * 4          # b1, w2
            + 2 * TB * 4)             # out double buffer (f32)
    vmem_limit = min(max(2 * need + (4 << 20), 16 << 20), 64 << 20)

    cost = pl.CostEstimate(
        flops=2 * B * D * HIDDEN + 2 * B * HIDDEN,
        transcendentals=B,
        bytes_accessed=B * D * 2 + D * HIDDEN * 2 + 2 * HIDDEN * 4 + 4
                       + num_tiles * TB * 4,
    )

    out_tiles = pl.pallas_call(
        _disc_kernel,
        out_shape=jax.ShapeDtypeStruct((num_tiles, TB), jnp.float32),
        grid=grid,
        in_specs=[
            pl.BlockSpec((TB, D), lambda i: (i, 0)),            # x: tiled over batch
            pl.BlockSpec((D, HIDDEN), lambda i: (0, 0)),        # w1: resident
            pl.BlockSpec((1, HIDDEN), lambda i: (0, 0)),        # b1: resident
            pl.BlockSpec((1, HIDDEN), lambda i: (0, 0)),        # w2 row vec: resident
            pl.BlockSpec(memory_space=pltpu.MemorySpace.SMEM),  # b2 scalar in SMEM
        ],
        out_specs=pl.BlockSpec((1, TB), lambda i: (i, 0)),      # lane-dense output row
        compiler_params=pltpu.CompilerParams(
            dimension_semantics=("parallel",),   # v7x: shard batch tiles over 2 TCs
            vmem_limit_bytes=vmem_limit,
        ),
        cost_estimate=cost,
    )(x_bf, w1_bf, b1, w2, b2)

    # (num_tiles, TB) row-major == batch order; drop any pad rows from the last tile.
    return out_tiles.reshape(num_tiles * TB)[:B].reshape(B, 1)


def init_params(key, img_dim):
    """Deterministic init mimicking nn.Linear's U(-1/sqrt(fan_in), 1/sqrt(fan_in))."""
    k1, k2, k3, k4 = jax.random.split(key, 4)
    bound1 = 1.0 / jnp.sqrt(img_dim)
    bound2 = 1.0 / jnp.sqrt(HIDDEN)
    w1 = jax.random.uniform(k1, (img_dim, HIDDEN), jnp.float32, -bound1, bound1)
    b1 = jax.random.uniform(k2, (1, HIDDEN), jnp.float32, -bound1, bound1)
    w2 = jax.random.uniform(k3, (1, HIDDEN), jnp.float32, -bound2, bound2)
    b2 = jax.random.uniform(k4, (1, 1), jnp.float32, -bound2, bound2)
    return w1, b1, w2, b2


if __name__ == "__main__":
    key = jax.random.PRNGKey(0)
    kx, kp = jax.random.split(key)

    batch, img_dim = 8, 256  # small shapes consistent with Linear(img_dim, 128)
    x = jax.random.normal(kx, (batch, img_dim), dtype=jnp.float32)
    w1, b1, w2, b2 = init_params(kp, img_dim)

    out = discriminator_forward(x, w1, b1, w2, b2)
    out = jax.block_until_ready(out)
    assert out.shape == (batch, 1)
    assert bool(jnp.all(jnp.isfinite(out)))

    # Reference with the same bf16 layer-1 matmul (f32 accumulation) as the kernel.
    ref_h = jnp.dot(x.astype(jnp.bfloat16), w1.astype(jnp.bfloat16),
                    preferred_element_type=jnp.float32) + b1
    ref_h = jnp.where(ref_h > 0, ref_h, 0.1 * ref_h)
    ref = jax.nn.sigmoid(jnp.sum(ref_h * w2, axis=-1, keepdims=True) + b2[0, 0])
    assert jnp.allclose(out, ref, atol=2e-3, rtol=2e-3)

    # Loose sanity check against the pure-f32 forward (bf16 layer-1 tolerance).
    f32_h = x @ w1 + b1
    f32_h = jnp.where(f32_h > 0, f32_h, 0.1 * f32_h)
    f32_ref = jax.nn.sigmoid(jnp.sum(f32_h * w2, axis=-1, keepdims=True) + b2[0, 0])
    assert jnp.allclose(out, f32_ref, atol=5e-2, rtol=5e-2)

    print("KERNEL_OK")
</pallas_src>

<mosaic_0001>
module attributes {stable_mosaic.version = 11 : i64} {
  func.func @_disc_kernel(%arg0: i32, %arg1: memref<8x256xbf16, #tpu.memory_space<vmem>>, %arg2: memref<256x128xbf16, #tpu.memory_space<vmem>>, %arg3: memref<1x128xf32, #tpu.memory_space<vmem>>, %arg4: memref<1x128xf32, #tpu.memory_space<vmem>>, %arg5: memref<1x1xf32, #tpu.memory_space<smem>>, %arg6: memref<1x8xf32, #tpu.memory_space<vmem>>) attributes {dimension_semantics = [#tpu.dimension_semantics<parallel>], iteration_bounds = array<i64: 1>, scalar_prefetch = 0 : i64, scratch_operands = 0 : i64, tpu.core_type = #tpu.core_type<tc>, window_params = [{transform_indices = @transform_0, window_bounds = array<i64: 8, 256>}, {pipeline_mode = #tpu.pipeline_mode<synchronous>, transform_indices = @transform_1, window_bounds = array<i64: 256, 128>}, {pipeline_mode = #tpu.pipeline_mode<synchronous>, transform_indices = @transform_2, window_bounds = array<i64: 1, 128>}, {pipeline_mode = #tpu.pipeline_mode<synchronous>, transform_indices = @transform_3, window_bounds = array<i64: 1, 128>}, {transform_indices = @transform_4, window_bounds = array<i64: 1, 1>}, {transform_indices = @transform_5, window_bounds = array<i64: 1, 8>}]} {
    %c0 = arith.constant 0 : index
    %c0_0 = arith.constant 0 : index
    %0 = vector.load %arg1[%c0, %c0_0] : memref<8x256xbf16, #tpu.memory_space<vmem>>, vector<8x256xbf16>
    %c0_1 = arith.constant 0 : index
    %c0_2 = arith.constant 0 : index
    %1 = vector.load %arg2[%c0_1, %c0_2] : memref<256x128xbf16, #tpu.memory_space<vmem>>, vector<256x128xbf16>
    %cst = arith.constant dense<0.000000e+00> : vector<8x128xf32>
    %2 = tpu.matmul %0, %1, %cst {dimension_numbers = #tpu.dot_dimension_numbers<[1], [0], [0], [1], [0, 0, 1, 1], [], []>} : vector<8x256xbf16>, vector<256x128xbf16>, vector<8x128xf32> -> vector<8x128xf32>
    %c0_3 = arith.constant 0 : index
    %c0_4 = arith.constant 0 : index
    %3 = vector.load %arg3[%c0_3, %c0_4] : memref<1x128xf32, #tpu.memory_space<vmem>>, vector<1x128xf32>
    %4 = vector.broadcast %3 : vector<1x128xf32> to vector<8x128xf32>
    %5 = arith.addf %2, %4 : vector<8x128xf32>
    %cst_5 = arith.constant 0.000000e+00 : f32
    %6 = vector.broadcast %cst_5 : f32 to vector<8x128xf32>
    %7 = arith.cmpf ogt, %5, %6 : vector<8x128xf32>
    %cst_6 = arith.constant 1.000000e-01 : f32
    %8 = vector.broadcast %cst_6 : f32 to vector<8x128xf32>
    %9 = arith.mulf %8, %5 : vector<8x128xf32>
    %10 = arith.select %7, %5, %9 : vector<8x128xi1>, vector<8x128xf32>
    %c0_7 = arith.constant 0 : index
    %c0_8 = arith.constant 0 : index
    %11 = vector.load %arg4[%c0_7, %c0_8] : memref<1x128xf32, #tpu.memory_space<vmem>>, vector<1x128xf32>
    "tpu.trace_start"() <{level = 10 : i32, message = "od,td->ot"}> : () -> ()
    %cst_9 = arith.constant dense<0.000000e+00> : vector<1x8xf32>
    %12 = tpu.matmul %11, %10, %cst_9 {dimension_numbers = #tpu.dot_dimension_numbers<[1], [1], [0], [0], [0, 0, 1, 0], [], []>} : vector<1x128xf32>, vector<8x128xf32>, vector<1x8xf32> -> vector<1x8xf32>
    "tpu.trace_stop"() : () -> ()
    %c0_10 = arith.constant 0 : index
    %c0_11 = arith.constant 0 : index
    %13 = memref.load %arg5[%c0_10, %c0_11] : memref<1x1xf32, #tpu.memory_space<smem>>
    %14 = vector.broadcast %13 : f32 to vector<1x8xf32>
    %15 = arith.addf %12, %14 : vector<1x8xf32>
    %16 = math.absf %15 : vector<1x8xf32>
    %cst_12 = arith.constant 0.000000e+00 : f32
    %17 = vector.broadcast %cst_12 : f32 to vector<1x8xf32>
    %18 = arith.subf %17, %16 : vector<1x8xf32>
    %19 = math.exp %18 : vector<1x8xf32>
    %cst_13 = arith.constant 1.000000e+00 : f32
    %20 = vector.broadcast %cst_13 : f32 to vector<1x8xf32>
    %21 = arith.addf %20, %19 : vector<1x8xf32>
    %22 = tpu.reciprocal %21 {approx = true} : vector<1x8xf32> -> vector<1x8xf32>
    %cst_14 = arith.constant 0.000000e+00 : f32
    %23 = vector.broadcast %cst_14 : f32 to vector<1x8xf32>
    %24 = arith.cmpf oge, %15, %23 : vector<1x8xf32>
    %25 = arith.mulf %19, %22 : vector<1x8xf32>
    %26 = arith.select %24, %22, %25 : vector<1x8xi1>, vector<1x8xf32>
    %c0_15 = arith.constant 0 : index
    %c0_16 = arith.constant 0 : index
    %27 = vector.load %arg6[%c0_15, %c0_16] : memref<1x8xf32, #tpu.memory_space<vmem>>, vector<1x8xf32>
    tpu.vector_store %arg6[%c0_15, %c0_16], %26 {strides = array<i32>} : memref<1x8xf32, #tpu.memory_space<vmem>>, vector<1x8xf32>,
    return
  }
  func.func @transform_0(%arg0: i32) -> (i32, i32) {
    %c0_i32 = arith.constant 0 : i32
    %c0_i32_0 = arith.constant 0 : i32
    return %arg0, %c0_i32 : i32, i32
  }
  func.func @transform_1(%arg0: i32) -> (i32, i32) {
    %c0_i32 = arith.constant 0 : i32
    %c0_i32_0 = arith.constant 0 : i32
    %c0_i32_1 = arith.constant 0 : i32
    return %c0_i32, %c0_i32_0 : i32, i32
  }
  func.func @transform_2(%arg0: i32) -> (i32, i32) {
    %c0_i32 = arith.constant 0 : i32
    %c0_i32_0 = arith.constant 0 : i32
    %c0_i32_1 = arith.constant 0 : i32
    return %c0_i32, %c0_i32_0 : i32, i32
  }
  func.func @transform_3(%arg0: i32) -> (i32, i32) {
    %c0_i32 = arith.constant 0 : i32
    %c0_i32_0 = arith.constant 0 : i32
    %c0_i32_1 = arith.constant 0 : i32
    return %c0_i32, %c0_i32_0 : i32, i32
  }
  func.func @transform_4(%arg0: i32) -> (i32, i32) {
    %c0_i32 = arith.constant 0 : i32
    %c0_i32_0 = arith.constant 0 : i32
    %c0_i32_1 = arith.constant 0 : i32
    return %c0_i32, %c0_i32_0 : i32, i32
  }
  func.func @transform_5(%arg0: i32) -> (i32, i32) {
    %c0_i32 = arith.constant 0 : i32
    %c0_i32_0 = arith.constant 0 : i32
    return %arg0, %c0_i32 : i32, i32
  }
}

</mosaic_0001>

<llo_original>
// kernel: tpu_custom_call.1
$region0: #{tpu_custom_call.1}
  #allocation0 [shape = 'u32[]', space=smem, size = 0x4, offset = 0x4, fixed_abs, tag = 'smem constant byte address 0x4 - core index']
  #allocation1 [shape = 'u32[144,128]{1,0:T(1,128)}', space=vmem, size = 0x12000, scoped, tag = 'internal scratch']
  #allocation2 [shape = 'f32[1,1]{1,0:T(1,128)S(6)}', space=smem, size = 0x200, scoped, tag = 'scoped memory for tpu_custom_call.1']
  %s0 = inlined_call_operand.hbm [shape: bf16[8,256], index: 0, kind: input, shape index: {}]
  %s1 = inlined_call_operand.hbm [shape: bf16[256,128], index: 1, kind: input, shape index: {}]
  %s2 = inlined_call_operand.vmem [shape: f32[1,128], index: 2, kind: input, shape index: {}]
  %s3 = inlined_call_operand.vmem [shape: f32[1,128], index: 3, kind: input, shape index: {}]
  %s4 = inlined_call_operand.<no memory space> [shape: f32[1,1], index: 4, kind: input, shape index: {}]
  %s5 = inlined_call_operand.hbm [shape: f32[1,8], index: 5, kind: output, shape index: {}]
  %s6 = sld [smem:[#allocation0]]
  $region38: #{tpu_custom_call.1} parent=0
    _
  %s8 = ssub.s32 1, %s6
  %s9 = scalar_select 0, %s8, %s6
  %10 = sst [smem:[#allocation2]] %s4
  $region1: #{tpu_custom_call.1} parent=0
    #allocation3 [shape = 'u8[4096]{0}', space=vmem, size = 0x1000, scoped, tag = 'input window, operand 0, single buffered']
    #allocation4 [shape = 's32[1]{0}', space=sflag, size = 0x4, scoped, tag = 'scoped memory for tpu_custom_call.1']
    #allocation5 [shape = 's32[1]{0}', space=sflag, size = 0x4, scoped, tag = 'scoped memory for tpu_custom_call.1']
    #allocation6 [shape = 'u8[65536]{0}', space=vmem, size = 0x10000, scoped, tag = 'input window, operand 1, single buffered']
    #allocation7 [shape = 's32[1]{0}', space=sflag, size = 0x4, scoped, tag = 'scoped memory for tpu_custom_call.1']
    #allocation8 [shape = 'u8[512]{0}', space=vmem, size = 0x400, scoped, tag = 'output window, operand 0, single buffered']
    %11 = vsyncpa [#allocation4], 0
    %12 = vsyncpa [#allocation7], 0
    %13 = vsyncpa [#allocation5], 0
    // Predicated region
    $region2: #{tpu_custom_call.1} parent=1 // pred_check
      _
    $region3: #{tpu_custom_call.1} parent=1 // pred_check_branch
      %15 = sbr.rel (0) target = $region5
    $region4: #{tpu_custom_call.1} parent=1 // pred_region
      %s17 = ssub.s32 128, 128
      %18 = vsyncadd [#allocation4], %s17
      %s20 = sshll.u32 [#allocation3], 4
      %s21 = int_to_ptr.vmem [resolvable:$true] %s20
      %23 = dma.hbm_to_vmem [thread:$0]  %s0, 128, %s21, [#allocation4]
    $region5: #{tpu_custom_call.1} parent=1 // pred_fallthru
      _
    // Predicated region
    $region6: #{tpu_custom_call.1} parent=1 // pred_check
      _
    $region7: #{tpu_custom_call.1} parent=1 // pred_check_branch
      %25 = sbr.rel (0) target = $region9
    $region8: #{tpu_custom_call.1} parent=1 // pred_region
      %s27 = ssub.s32 2048, 2048
      %28 = vsyncadd [#allocation7], %s27
      %s29 = sshll.u32 [#allocation6], 4
      %s30 = int_to_ptr.vmem [resolvable:$true] %s29
      %35 = dma.hbm_to_vmem [thread:$0]  %s1, 2048, %s30, [#allocation7], 64, 64, 4
    $region9: #{tpu_custom_call.1} parent=1 // pred_fallthru
      _
    // Predicated region
    $region10: #{tpu_custom_call.1} parent=1 // pred_check
      _
    $region11: #{tpu_custom_call.1} parent=1 // pred_check_branch
      %37 = sbr.rel (0) target = $region13
    $region12: #{tpu_custom_call.1} parent=1 // pred_region
      _
    $region13: #{tpu_custom_call.1} parent=1 // pred_fallthru
      _
    // Predicated region
    $region14: #{tpu_custom_call.1} parent=1 // pred_check
      _
    $region15: #{tpu_custom_call.1} parent=1 // pred_check_branch
      %39 = sbr.rel (0) target = $region17
    $region16: #{tpu_custom_call.1} parent=1 // pred_region
      _
    $region17: #{tpu_custom_call.1} parent=1 // pred_fallthru
      _
    // Predicated region
    $region18: #{tpu_custom_call.1} parent=1 // pred_check
      _
    $region19: #{tpu_custom_call.1} parent=1 // pred_check_branch
      %41 = sbr.rel (0) target = $region21
    $region20: #{tpu_custom_call.1} parent=1 // pred_region
      _
    $region21: #{tpu_custom_call.1} parent=1 // pred_fallthru
      _
    // Predicated region
    $region22: #{tpu_custom_call.1} parent=1 // pred_check
      _
    $region23: #{tpu_custom_call.1} parent=1 // pred_check_branch
      %43 = sbr.rel (0) target = $region25
    $region24: #{tpu_custom_call.1} parent=1 // pred_region
      %44 = dma.done [#allocation4], 128
    $region25: #{tpu_custom_call.1} parent=1 // pred_fallthru
      _
    // Predicated region
    $region26: #{tpu_custom_call.1} parent=1 // pred_check
      _
    $region27: #{tpu_custom_call.1} parent=1 // pred_check_branch
      %46 = sbr.rel (0) target = $region29
    $region28: #{tpu_custom_call.1} parent=1 // pred_region
      %47 = dma.done [#allocation7], 2048
    $region29: #{tpu_custom_call.1} parent=1 // pred_fallthru
      _
    %v49 = vld [vmem:[#allocation3] sm:$0xff]
    %v50 = vld [vmem:[#allocation6] sm:$0xf]
    %v51 = vld [vmem:[#allocation6 + $0x4] sm:$0xf]
    %v52 = vld [vmem:[#allocation6 + $0x8] sm:$0xf]
    %v53 = vld [vmem:[#allocation6 + $0xc] sm:$0xf]
    %v54 = vld [vmem:[#allocation6 + $0x10] sm:$0xf]
    %v55 = vld [vmem:[#allocation6 + $0x14] sm:$0xf]
    %v56 = vld [vmem:[#allocation6 + $0x18] sm:$0xf]
    %v57 = vld [vmem:[#allocation6 + $0x1c] sm:$0xf]
    %v58 = vld [vmem:[#allocation6 + $0x20] sm:$0xf]
    %v59 = vld [vmem:[#allocation6 + $0x24] sm:$0xf]
    %v60 = vld [vmem:[#allocation6 + $0x28] sm:$0xf]
    %v61 = vld [vmem:[#allocation6 + $0x2c] sm:$0xf]
    %v62 = vld [vmem:[#allocation6 + $0x30] sm:$0xf]
    %v63 = vld [vmem:[#allocation6 + $0x34] sm:$0xf]
    %v64 = vld [vmem:[#allocation6 + $0x38] sm:$0xf]
    %v65 = vld [vmem:[#allocation6 + $0x3c] sm:$0xf]
    %v66 = vld [vmem:[#allocation6 + $0x40] sm:$0xf]
    %v67 = vld [vmem:[#allocation6 + $0x44] sm:$0xf]
    %v68 = vld [vmem:[#allocation6 + $0x48] sm:$0xf]
    %v69 = vld [vmem:[#allocation6 + $0x4c] sm:$0xf]
    %v70 = vld [vmem:[#allocation6 + $0x50] sm:$0xf]
    %v71 = vld [vmem:[#allocation6 + $0x54] sm:$0xf]
    %v72 = vld [vmem:[#allocation6 + $0x58] sm:$0xf]
    %v73 = vld [vmem:[#allocation6 + $0x5c] sm:$0xf]
    %v74 = vld [vmem:[#allocation6 + $0x60] sm:$0xf]
    %v75 = vld [vmem:[#allocation6 + $0x64] sm:$0xf]
    %v76 = vld [vmem:[#allocation6 + $0x68] sm:$0xf]
    %v77 = vld [vmem:[#allocation6 + $0x6c] sm:$0xf]
    %v78 = vld [vmem:[#allocation6 + $0x70] sm:$0xf]
    %v79 = vld [vmem:[#allocation6 + $0x74] sm:$0xf]
    %v80 = vld [vmem:[#allocation6 + $0x78] sm:$0xf]
    %v81 = vld [vmem:[#allocation6 + $0x7c] sm:$0xf]
    %v82 = vld [vmem:[%s2] sm:$0x1]
    %v84 = vlaneseq
    %v85 = vshrl.u32 %v84, 7
    %v86 = vsub.s32 0, %v85
    %v87 = vrot.slane %v82, %v86
    %v90 = vunpack.c.l.b16 %v49
    %v91 = vunpack.c.h.b16 %v49
    %v92 = vpack.c.b16 %v90, %v90
    %v93 = vpack.c.b16 %v91, %v91
    %v128 = vunpack.c.l.b16 %v50
    %v129 = vunpack.c.l.b16 %v51
    %v130 = vunpack.c.l.b16 %v52
    %v131 = vunpack.c.l.b16 %v53
    %v132 = vunpack.c.l.b16 %v54
    %v133 = vunpack.c.l.b16 %v55
    %v134 = vunpack.c.l.b16 %v56
    %v135 = vunpack.c.l.b16 %v57
    %v136 = vunpack.c.l.b16 %v58
    %v137 = vunpack.c.l.b16 %v59
    %v138 = vunpack.c.l.b16 %v60
    %v139 = vunpack.c.l.b16 %v61
    %v140 = vunpack.c.l.b16 %v62
    %v141 = vunpack.c.l.b16 %v63
    %v142 = vunpack.c.l.b16 %v64
    %v143 = vunpack.c.l.b16 %v65
    %v144 = vunpack.c.l.b16 %v66
    %v145 = vunpack.c.l.b16 %v67
    %v146 = vunpack.c.l.b16 %v68
    %v147 = vunpack.c.l.b16 %v69
    %v148 = vunpack.c.l.b16 %v70
    %v149 = vunpack.c.l.b16 %v71
    %v150 = vunpack.c.l.b16 %v72
    %v151 = vunpack.c.l.b16 %v73
    %v152 = vunpack.c.l.b16 %v74
    %v153 = vunpack.c.l.b16 %v75
    %v154 = vunpack.c.l.b16 %v76
    %v155 = vunpack.c.l.b16 %v77
    %v156 = vunpack.c.l.b16 %v78
    %v157 = vunpack.c.l.b16 %v79
    %v158 = vunpack.c.l.b16 %v80
    %v159 = vunpack.c.l.b16 %v81
    %v160 = vpack.c.b16 %v129, %v128
    %v161 = vpack.c.b16 %v131, %v130
    %v162 = vpack.c.b16 %v133, %v132
    %v163 = vpack.c.b16 %v135, %v134
    %v164 = vpack.c.b16 %v137, %v136
    %v165 = vpack.c.b16 %v139, %v138
    %v166 = vpack.c.b16 %v141, %v140
    %v167 = vpack.c.b16 %v143, %v142
    %v168 = vpack.c.b16 %v145, %v144
    %v169 = vpack.c.b16 %v147, %v146
    %v170 = vpack.c.b16 %v149, %v148
    %v171 = vpack.c.b16 %v151, %v150
    %v172 = vpack.c.b16 %v153, %v152
    %v173 = vpack.c.b16 %v155, %v154
    %v174 = vpack.c.b16 %v157, %v156
    %v175 = vpack.c.b16 %v159, %v158
    %192 = vmatprep.subr.bf16.mxu0 0
    %193 = vmatpush1.bf16.msra.mxu0 %v160
    %194 = vmatprep.subr.bf16.mxu0 0
    %195 = vmatpush1.bf16.msra.mxu0 %v161
    %196 = vmatprep.subr.bf16.mxu0 0
    %197 = vmatpush1.bf16.msra.mxu0 %v162
    %198 = vmatprep.subr.bf16.mxu0 0
    %199 = vmatpush1.bf16.msra.mxu0 %v163
    %200 = vmatprep.subr.bf16.mxu0 0
    %201 = vmatpush1.bf16.msra.mxu0 %v164
    %202 = vmatprep.subr.bf16.mxu0 0
    %203 = vmatpush1.bf16.msra.mxu0 %v165
    %204 = vmatprep.subr.bf16.mxu0 0
    %205 = vmatpush1.bf16.msra.mxu0 %v166
    %206 = vmatprep.subr.bf16.mxu0 0
    %207 = vmatpush1.bf16.msra.mxu0 %v167
    %208 = vmatprep.subr.bf16.mxu0 0
    %209 = vmatpush1.bf16.msra.mxu0 %v168
    %210 = vmatprep.subr.bf16.mxu0 0
    %211 = vmatpush1.bf16.msra.mxu0 %v169
    %212 = vmatprep.subr.bf16.mxu0 0
    %213 = vmatpush1.bf16.msra.mxu0 %v170
    %214 = vmatprep.subr.bf16.mxu0 0
    %215 = vmatpush1.bf16.msra.mxu0 %v171
    %216 = vmatprep.subr.bf16.mxu0 0
    %217 = vmatpush1.bf16.msra.mxu0 %v172
    %218 = vmatprep.subr.bf16.mxu0 0
    %219 = vmatpush1.bf16.msra.mxu0 %v173
    %220 = vmatprep.subr.bf16.mxu0 0
    %221 = vmatpush1.bf16.msra.mxu0 %v174
    %222 = vmatprep.subr.bf16.mxu0 0
    %223 = vmatpush1.bf16.msra.mxu0 %v175
    %224 = vmatprep.mubr.bf16.mxu0 %v93
    %225 = vmatmul.mubr.bf16.gmra.mrb[0].mxu0 %v92
    %v226 = vpop.f32.mrb[0].mxu0
    %v227 = vadd.f32 %v87, %v226
    %v228 = vpop.f32.mrb[0].mxu0
    %v229 = vpop.f32.mrb[0].mxu0
    %v230 = vpop.f32.mrb[0].mxu0
    %231 = vdwg.mxu0
    %vm232 = vcmp.gt.f32.partialorder %v227, 0.0
    %v233 = vmul.f32 %v227, 0.1
    %v234 = vsel %vm232, %v227, %v233
    %v235 = vld [vmem:[%s3] sm:$0x1]
    %s236 = sld [smem:[#allocation2]]
    %v237 = vstv %s236
    %238 = vmatprep.subr.mxu0 0.0
    %239 = vmatpush1.xpose.msra.mxu0 %v234
    %240 = vmatprep.subr.mxu0 0.0
    %241 = vmatpush1.xpose.msra.mxu0 0.0
    %242 = vmatprep.subr.mxu0 0.0
    %243 = vmatpush1.xpose.msra.mxu0 0.0
    %244 = vmatprep.subr.mxu0 0.0
    %245 = vmatpush1.xpose.msra.mxu0 0.0
    %246 = vmatprep.subr.mxu0 0.0
    %247 = vmatpush1.xpose.msra.mxu0 0.0
    %248 = vmatprep.subr.mxu0 0.0
    %249 = vmatpush1.xpose.msra.mxu0 0.0
    %250 = vmatprep.subr.mxu0 0.0
    %251 = vmatpush1.xpose.msra.mxu0 0.0
    %252 = vmatprep.subr.mxu0 0.0
    %253 = vmatpush1.xpose.msra.mxu0 0.0
    %254 = vmatprep.subr.mxu0 0.0
    %255 = vmatpush1.xpose.msra.mxu0 0.0
    %256 = vmatprep.subr.mxu0 0.0
    %257 = vmatpush1.xpose.msra.mxu0 0.0
    %258 = vmatprep.subr.mxu0 0.0
    %259 = vmatpush1.xpose.msra.mxu0 0.0
    %260 = vmatprep.subr.mxu0 0.0
    %261 = vmatpush1.xpose.msra.mxu0 0.0
    %262 = vmatprep.subr.mxu0 0.0
    %263 = vmatpush1.xpose.msra.mxu0 0.0
    %264 = vmatprep.subr.mxu0 0.0
    %265 = vmatpush1.xpose.msra.mxu0 0.0
    %266 = vmatprep.subr.mxu0 0.0
    %267 = vmatpush1.xpose.msra.mxu0 0.0
    %268 = vmatprep.subr.mxu0 0.0
    %269 = vmatpush1.xpose.msra.mxu0 0.0
    %270 = vmatprep.subr.mxu0 0.0
    %271 = vmatpush1.xpose.msra.mxu0 0.0
    %272 = vmatprep.subr.mxu0 0.0
    %273 = vmatpush1.xpose.msra.mxu0 0.0
    %274 = vmatprep.subr.mxu0 0.0
    %275 = vmatpush1.xpose.msra.mxu0 0.0
    %276 = vmatprep.subr.mxu0 0.0
    %277 = vmatpush1.xpose.msra.mxu0 0.0
    %278 = vmatprep.subr.mxu0 0.0
    %279 = vmatpush1.xpose.msra.mxu0 0.0
    %280 = vmatprep.subr.mxu0 0.0
    %281 = vmatpush1.xpose.msra.mxu0 0.0
    %282 = vmatprep.subr.mxu0 0.0
    %283 = vmatpush1.xpose.msra.mxu0 0.0
    %284 = vmatprep.subr.mxu0 0.0
    %285 = vmatpush1.xpose.msra.mxu0 0.0
    %286 = vmatprep.subr.mxu0 0.0
    %287 = vmatpush1.xpose.msra.mxu0 0.0
    %288 = vmatprep.subr.mxu0 0.0
    %289 = vmatpush1.xpose.msra.mxu0 0.0
    %290 = vmatprep.subr.mxu0 0.0
    %291 = vmatpush1.xpose.msra.mxu0 0.0
    %292 = vmatprep.subr.mxu0 0.0
    %293 = vmatpush1.xpose.msra.mxu0 0.0
    %294 = vmatprep.subr.mxu0 0.0
    %295 = vmatpush1.xpose.msra.mxu0 0.0
    %296 = vmatprep.subr.mxu0 0.0
    %297 = vmatpush1.xpose.msra.mxu0 0.0
    %298 = vmatprep.subr.mxu0 0.0
    %299 = vmatpush1.xpose.msra.mxu0 0.0
    %300 = vmatprep.subr.mxu0 0.0
    %301 = vmatpush1.xpose.msra.mxu0 0.0
    %302 = vmatprep.mubr.f32.mxu0 0.0
    %303 = vmatmul.mubr.f32.gmra.mrb[0].mxu0 %v235
    %v304 = vpop.f32.mrb[0].mxu0
    %v305 = vadd.f32 %v237, %v304
    %v306 = vpop.f32.mrb[0].mxu0
    %307 = vdwg.mxu0
    %v308 = vand.u32 2147483647, %v305
    %v309 = vsub.f32 0.0, %v308
    %v310 = vmul.f32 %v309, 1.442695
    %v311 = vpow.pop %v310
    %v312 = vadd.f32 %v311, 1.0
    %v313 = vrcp.pop %v312
    %vm314 = vcmp.ge.f32.partialorder %v305, 0.0
    %v315 = vmul.f32 %v311, %v313
    %v316 = vsel %vm314, %v313, %v315
    %vm317 = vcmask 57344
    %318 = vst.msk [vmem:[#allocation8] sm:$0x1] %vm317, %v316
    // Predicated region
    $region30: #{tpu_custom_call.1} parent=1 // pred_check
      _
    $region31: #{tpu_custom_call.1} parent=1 // pred_check_branch
      %320 = sbr.rel (0) target = $region33
    $region32: #{tpu_custom_call.1} parent=1 // pred_region
      %s322 = ssub.s32 16, 16
      %323 = vsyncadd [#allocation5], %s322
      %s325 = sshll.u32 [#allocation8], 4
      %s326 = int_to_ptr.vmem [resolvable:$true] %s325
      %328 = dma.vmem_to_hbm [thread:$0]  %s326, 16, %s5, [#allocation5]
    $region33: #{tpu_custom_call.1} parent=1 // pred_fallthru
      _
    // Predicated region
    $region34: #{tpu_custom_call.1} parent=1 // pred_check
      _
    $region35: #{tpu_custom_call.1} parent=1 // pred_check_branch
      %330 = sbr.rel (0) target = $region37
    $region36: #{tpu_custom_call.1} parent=1 // pred_region
      %331 = dma.done [#allocation5], 16
    $region37: #{tpu_custom_call.1} parent=1 // pred_fallthru
      _
    %332 = vsyncpa [#allocation4], 1
    %333 = vsyncpa [#allocation7], 1
    %334 = vsyncpa [#allocation5], 1

</llo_original>
